<compile_context>
chip_gen: v7x
topology: tpu7x:2x2x1
jax: 0.10.0
libtpu: 0.0.40
codegen_flags: <defaults>
</compile_context>

<pallas_src>
import functools

import jax
import jax.numpy as jnp
from jax import lax
from jax.experimental import pallas as pl
from jax.experimental.pallas import tpu as pltpu


_MIN_TILE = 256  # multiple of (8 sublane, 128 lane) constraints for both blocks


def _leaky_relu(x, negative_slope=0.01):
    # Identical to leaky_relu for finite inputs; mul+max instead of cmp+mul+sel.
    return jnp.maximum(x, negative_slope * x)


def mlp_kernel(x_ref,
               w1_ref, b1_ref,
               w2_ref, b2_ref,
               w3_ref, b3_ref,
               w4_ref, b4_ref,
               o_ref):
    # x_ref: (T, 44) f32 -> cast to bf16 in VMEM (no wrapper-side astype pass).
    # Weights bf16, biases f32 (1, out).  o_ref: (1, T) f32, lane-dense row.
    x = x_ref[...].astype(jnp.bfloat16)

    h = jnp.dot(x, w1_ref[...],
                preferred_element_type=jnp.float32) + b1_ref[...]
    h = _leaky_relu(h).astype(jnp.bfloat16)            # (T, 128)

    h = jnp.dot(h, w2_ref[...],
                preferred_element_type=jnp.float32) + b2_ref[...]
    h = _leaky_relu(h).astype(jnp.bfloat16)            # (T, 64)

    h = jnp.dot(h, w3_ref[...],
                preferred_element_type=jnp.float32) + b3_ref[...]
    h = _leaky_relu(h).astype(jnp.bfloat16)            # (T, 32)

    # Final matvec computed transposed so the store is a full lane-dense (1, T)
    # row: (1, 32) contracted with (T, 32) over the 32-dim -> (1, T).
    y = lax.dot_general(
        w4_ref[...], h,
        dimension_numbers=(((1,), (1,)), ((), ())),
        preferred_element_type=jnp.float32,
    ) + b4_ref[...]                                    # (1, T) f32

    o_ref[...] = y.astype(o_ref.dtype)


@functools.partial(jax.jit, static_argnames=("batch_tile",))
def neural_network_forward(x, params, *, batch_tile=4096):
    """x: (B, 44) float32.  params: w1..w3 (in,out), w4 (in,1), b1..b4 (1,out)."""
    B, F = x.shape
    assert F == 44

    # Pick an effective tile:
    #  * keep >= 2 grid steps when possible so v7x's two TensorCores both get
    #    work (batch axis is "parallel"),
    #  * shrink to _MIN_TILE for tiny batches so padding waste is bounded.
    if B >= 2 * _MIN_TILE:
        cap = pl.cdiv(pl.cdiv(B, 2), _MIN_TILE) * _MIN_TILE
        tile = min(batch_tile, cap)
    else:
        tile = min(batch_tile, _MIN_TILE)

    num_tiles = pl.cdiv(B, tile)
    B_pad = num_tiles * tile
    if B_pad != B:
        x = jnp.pad(x, ((0, B_pad - B), (0, 0)))       # only pass over x, and
                                                       # only when B % tile != 0

    # bf16 weights (f32 accumulation inside the kernel); f32 biases.
    w1 = params["w1"].astype(jnp.bfloat16)
    w2 = params["w2"].astype(jnp.bfloat16)
    w3 = params["w3"].astype(jnp.bfloat16)
    w4 = params["w4"].T.astype(jnp.bfloat16)           # (1, 32) row layout
    b1, b2, b3, b4 = params["b1"], params["b2"], params["b3"], params["b4"]

    full = lambda shape: pl.BlockSpec(shape, lambda i: (0, 0))

    weight_bytes = sum(int(w.size) * w.dtype.itemsize
                       for w in (w1, w2, w3, w4, b1, b2, b3, b4))
    flops = 2 * B_pad * (44 * 128 + 128 * 64 + 64 * 32 + 32 * 1)
    bytes_accessed = B_pad * 44 * 4 + B_pad * 4 + weight_bytes

    out_row = pl.pallas_call(
        mlp_kernel,
        out_shape=jax.ShapeDtypeStruct((1, B_pad), jnp.float32),
        grid_spec=pltpu.PrefetchScalarGridSpec(
            num_scalar_prefetch=0,
            grid=(num_tiles,),
            in_specs=[
                pl.BlockSpec((tile, 44), lambda i: (i, 0)),
                full(w1.shape), full(b1.shape),
                full(w2.shape), full(b2.shape),
                full(w3.shape), full(b3.shape),
                full(w4.shape), full(b4.shape),
            ],
            out_specs=pl.BlockSpec((1, tile), lambda i: (0, i)),
        ),
        compiler_params=pltpu.CompilerParams(
            dimension_semantics=("parallel",),
            vmem_limit_bytes=32 * 1024 * 1024,
        ),
        cost_estimate=pl.CostEstimate(
            flops=flops, bytes_accessed=bytes_accessed, transcendentals=0),
    )(x, w1, b1, w2, b2, w3, b3, w4, b4)

    # (1, B_pad) -> (B, 1); the [:B] slice drops padded-row garbage.
    return out_row.reshape(B_pad, 1)[:B]


def init_params(key):
    """Deterministic init mimicking torch.nn.Linear default U(-1/sqrt(fan_in), +)."""
    dims = [(44, 128), (128, 64), (64, 32), (32, 1)]
    params = {}
    for idx, (fan_in, fan_out) in enumerate(dims, start=1):
        key, kw, kb = jax.random.split(key, 3)
        bound = 1.0 / jnp.sqrt(fan_in)
        params[f"w{idx}"] = jax.random.uniform(
            kw, (fan_in, fan_out), jnp.float32, -bound, bound)
        params[f"b{idx}"] = jax.random.uniform(
            kb, (1, fan_out), jnp.float32, -bound, bound)
    return params


def reference_forward(x, params):
    """Pure-JAX reference with the same bf16-input / f32-accumulate math."""
    h = x.astype(jnp.bfloat16)
    for idx in range(1, 4):
        w = params[f"w{idx}"].astype(jnp.bfloat16)
        h = jnp.dot(h, w, preferred_element_type=jnp.float32) + params[f"b{idx}"]
        h = jnp.maximum(h, 0.01 * h).astype(jnp.bfloat16)
    w4 = params["w4"].astype(jnp.bfloat16)
    return jnp.dot(h, w4, preferred_element_type=jnp.float32) + params["b4"]


if __name__ == "__main__":
    key = jax.random.PRNGKey(0)
    params = init_params(key)

    # Case 1: small batch, NOT a tile multiple (exercises padding + slice).
    key, kx = jax.random.split(key)
    x_small = jax.random.normal(kx, (37, 44), jnp.float32)
    out_small = jax.block_until_ready(neural_network_forward(x_small, params))
    ref_small = reference_forward(x_small, params)
    assert out_small.shape == (37, 1), out_small.shape
    assert jnp.allclose(out_small, ref_small, atol=5e-3, rtol=5e-3)

    # Case 2: batch large enough to produce a >= 2-step grid (multi-tile path).
    key, kx = jax.random.split(key)
    x_big = jax.random.normal(kx, (600, 44), jnp.float32)
    out_big = jax.block_until_ready(neural_network_forward(x_big, params))
    ref_big = reference_forward(x_big, params)
    assert out_big.shape == (600, 1), out_big.shape
    assert jnp.allclose(out_big, ref_big, atol=5e-3, rtol=5e-3)

    print("KERNEL_OK")
</pallas_src>

<mosaic_0001>
module attributes {stable_mosaic.version = 11 : i64} {
  func.func @mlp_kernel(%arg0: i32, %arg1: memref<256x44xf32, #tpu.memory_space<vmem>>, %arg2: memref<44x128xbf16, #tpu.memory_space<vmem>>, %arg3: memref<1x128xf32, #tpu.memory_space<vmem>>, %arg4: memref<128x64xbf16, #tpu.memory_space<vmem>>, %arg5: memref<1x64xf32, #tpu.memory_space<vmem>>, %arg6: memref<64x32xbf16, #tpu.memory_space<vmem>>, %arg7: memref<1x32xf32, #tpu.memory_space<vmem>>, %arg8: memref<1x32xbf16, #tpu.memory_space<vmem>>, %arg9: memref<1x1xf32, #tpu.memory_space<vmem>>, %arg10: memref<1x256xf32, #tpu.memory_space<vmem>>) attributes {dimension_semantics = [#tpu.dimension_semantics<parallel>], iteration_bounds = array<i64: 1>, scalar_prefetch = 0 : i64, scratch_operands = 0 : i64, tpu.core_type = #tpu.core_type<tc>, window_params = [{transform_indices = @transform_0, window_bounds = array<i64: 256, 44>}, {pipeline_mode = #tpu.pipeline_mode<synchronous>, transform_indices = @transform_1, window_bounds = array<i64: 44, 128>}, {pipeline_mode = #tpu.pipeline_mode<synchronous>, transform_indices = @transform_2, window_bounds = array<i64: 1, 128>}, {pipeline_mode = #tpu.pipeline_mode<synchronous>, transform_indices = @transform_3, window_bounds = array<i64: 128, 64>}, {pipeline_mode = #tpu.pipeline_mode<synchronous>, transform_indices = @transform_4, window_bounds = array<i64: 1, 64>}, {pipeline_mode = #tpu.pipeline_mode<synchronous>, transform_indices = @transform_5, window_bounds = array<i64: 64, 32>}, {pipeline_mode = #tpu.pipeline_mode<synchronous>, transform_indices = @transform_6, window_bounds = array<i64: 1, 32>}, {pipeline_mode = #tpu.pipeline_mode<synchronous>, transform_indices = @transform_7, window_bounds = array<i64: 1, 32>}, {pipeline_mode = #tpu.pipeline_mode<synchronous>, transform_indices = @transform_8, window_bounds = array<i64: 1, 1>}, {transform_indices = @transform_9, window_bounds = array<i64: 1, 256>}]} {
    %c0 = arith.constant 0 : index
    %c0_0 = arith.constant 0 : index
    %0 = vector.load %arg1[%c0, %c0_0] : memref<256x44xf32, #tpu.memory_space<vmem>>, vector<256x44xf32>
    %1 = arith.truncf %0 : vector<256x44xf32> to vector<256x44xbf16>
    %c0_1 = arith.constant 0 : index
    %c0_2 = arith.constant 0 : index
    %2 = vector.load %arg2[%c0_1, %c0_2] : memref<44x128xbf16, #tpu.memory_space<vmem>>, vector<44x128xbf16>
    %cst = arith.constant dense<0.000000e+00> : vector<256x128xf32>
    %3 = tpu.matmul %1, %2, %cst {dimension_numbers = #tpu.dot_dimension_numbers<[1], [0], [0], [1], [0, 0, 1, 1], [], []>} : vector<256x44xbf16>, vector<44x128xbf16>, vector<256x128xf32> -> vector<256x128xf32>
    %c0_3 = arith.constant 0 : index
    %c0_4 = arith.constant 0 : index
    %4 = vector.load %arg3[%c0_3, %c0_4] : memref<1x128xf32, #tpu.memory_space<vmem>>, vector<1x128xf32>
    %5 = vector.broadcast %4 : vector<1x128xf32> to vector<256x128xf32>
    %6 = arith.addf %3, %5 : vector<256x128xf32>
    %cst_5 = arith.constant 0.00999999977 : f32
    %7 = vector.broadcast %cst_5 : f32 to vector<256x128xf32>
    %8 = arith.mulf %7, %6 : vector<256x128xf32>
    %9 = arith.maximumf %6, %8 : vector<256x128xf32>
    %10 = arith.truncf %9 : vector<256x128xf32> to vector<256x128xbf16>
    %c0_6 = arith.constant 0 : index
    %c0_7 = arith.constant 0 : index
    %11 = vector.load %arg4[%c0_6, %c0_7] : memref<128x64xbf16, #tpu.memory_space<vmem>>, vector<128x64xbf16>
    %cst_8 = arith.constant dense<0.000000e+00> : vector<256x64xf32>
    %12 = tpu.matmul %10, %11, %cst_8 {dimension_numbers = #tpu.dot_dimension_numbers<[1], [0], [0], [1], [0, 0, 1, 1], [], []>} : vector<256x128xbf16>, vector<128x64xbf16>, vector<256x64xf32> -> vector<256x64xf32>
    %c0_9 = arith.constant 0 : index
    %c0_10 = arith.constant 0 : index
    %13 = vector.load %arg5[%c0_9, %c0_10] : memref<1x64xf32, #tpu.memory_space<vmem>>, vector<1x64xf32>
    %14 = vector.broadcast %13 : vector<1x64xf32> to vector<256x64xf32>
    %15 = arith.addf %12, %14 : vector<256x64xf32>
    %cst_11 = arith.constant 0.00999999977 : f32
    %16 = vector.broadcast %cst_11 : f32 to vector<256x64xf32>
    %17 = arith.mulf %16, %15 : vector<256x64xf32>
    %18 = arith.maximumf %15, %17 : vector<256x64xf32>
    %19 = arith.truncf %18 : vector<256x64xf32> to vector<256x64xbf16>
    %c0_12 = arith.constant 0 : index
    %c0_13 = arith.constant 0 : index
    %20 = vector.load %arg6[%c0_12, %c0_13] : memref<64x32xbf16, #tpu.memory_space<vmem>>, vector<64x32xbf16>
    %cst_14 = arith.constant dense<0.000000e+00> : vector<256x32xf32>
    %21 = tpu.matmul %19, %20, %cst_14 {dimension_numbers = #tpu.dot_dimension_numbers<[1], [0], [0], [1], [0, 0, 1, 1], [], []>} : vector<256x64xbf16>, vector<64x32xbf16>, vector<256x32xf32> -> vector<256x32xf32>
    %c0_15 = arith.constant 0 : index
    %c0_16 = arith.constant 0 : index
    %22 = vector.load %arg7[%c0_15, %c0_16] : memref<1x32xf32, #tpu.memory_space<vmem>>, vector<1x32xf32>
    %23 = vector.broadcast %22 : vector<1x32xf32> to vector<256x32xf32>
    %24 = arith.addf %21, %23 : vector<256x32xf32>
    %cst_17 = arith.constant 0.00999999977 : f32
    %25 = vector.broadcast %cst_17 : f32 to vector<256x32xf32>
    %26 = arith.mulf %25, %24 : vector<256x32xf32>
    %27 = arith.maximumf %24, %26 : vector<256x32xf32>
    %28 = arith.truncf %27 : vector<256x32xf32> to vector<256x32xbf16>
    %c0_18 = arith.constant 0 : index
    %c0_19 = arith.constant 0 : index
    %29 = vector.load %arg8[%c0_18, %c0_19] : memref<1x32xbf16, #tpu.memory_space<vmem>>, vector<1x32xbf16>
    %cst_20 = arith.constant dense<0.000000e+00> : vector<1x256xf32>
    %30 = tpu.matmul %29, %28, %cst_20 {dimension_numbers = #tpu.dot_dimension_numbers<[1], [1], [0], [0], [0, 0, 1, 0], [], []>} : vector<1x32xbf16>, vector<256x32xbf16>, vector<1x256xf32> -> vector<1x256xf32>
    %c0_21 = arith.constant 0 : index
    %c0_22 = arith.constant 0 : index
    %31 = vector.load %arg9[%c0_21, %c0_22] : memref<1x1xf32, #tpu.memory_space<vmem>>, vector<1x1xf32>
    %32 = vector.broadcast %31 : vector<1x1xf32> to vector<1x256xf32>
    %33 = arith.addf %30, %32 : vector<1x256xf32>
    %c0_23 = arith.constant 0 : index
    %c0_24 = arith.constant 0 : index
    %34 = vector.load %arg10[%c0_23, %c0_24] : memref<1x256xf32, #tpu.memory_space<vmem>>, vector<1x256xf32>
    tpu.vector_store %arg10[%c0_23, %c0_24], %33 {strides = array<i32>} : memref<1x256xf32, #tpu.memory_space<vmem>>, vector<1x256xf32>,
    return
  }
  func.func @transform_0(%arg0: i32) -> (i32, i32) {
    %c0_i32 = arith.constant 0 : i32
    %c0_i32_0 = arith.constant 0 : i32
    return %arg0, %c0_i32 : i32, i32
  }
  func.func @transform_1(%arg0: i32) -> (i32, i32) {
    %c0_i32 = arith.constant 0 : i32
    %c0_i32_0 = arith.constant 0 : i32
    %c0_i32_1 = arith.constant 0 : i32
    return %c0_i32, %c0_i32_0 : i32, i32
  }
  func.func @transform_2(%arg0: i32) -> (i32, i32) {
    %c0_i32 = arith.constant 0 : i32
    %c0_i32_0 = arith.constant 0 : i32
    %c0_i32_1 = arith.constant 0 : i32
    return %c0_i32, %c0_i32_0 : i32, i32
  }
  func.func @transform_3(%arg0: i32) -> (i32, i32) {
    %c0_i32 = arith.constant 0 : i32
    %c0_i32_0 = arith.constant 0 : i32
    %c0_i32_1 = arith.constant 0 : i32
    return %c0_i32, %c0_i32_0 : i32, i32
  }
  func.func @transform_4(%arg0: i32) -> (i32, i32) {
    %c0_i32 = arith.constant 0 : i32
    %c0_i32_0 = arith.constant 0 : i32
    %c0_i32_1 = arith.constant 0 : i32
    return %c0_i32, %c0_i32_0 : i32, i32
  }
  func.func @transform_5(%arg0: i32) -> (i32, i32) {
    %c0_i32 = arith.constant 0 : i32
    %c0_i32_0 = arith.constant 0 : i32
    %c0_i32_1 = arith.constant 0 : i32
    return %c0_i32, %c0_i32_0 : i32, i32
  }
  func.func @transform_6(%arg0: i32) -> (i32, i32) {
    %c0_i32 = arith.constant 0 : i32
    %c0_i32_0 = arith.constant 0 : i32
    %c0_i32_1 = arith.constant 0 : i32
    return %c0_i32, %c0_i32_0 : i32, i32
  }
  func.func @transform_7(%arg0: i32) -> (i32, i32) {
    %c0_i32 = arith.constant 0 : i32
    %c0_i32_0 = arith.constant 0 : i32
    %c0_i32_1 = arith.constant 0 : i32
    return %c0_i32, %c0_i32_0 : i32, i32
  }
  func.func @transform_8(%arg0: i32) -> (i32, i32) {
    %c0_i32 = arith.constant 0 : i32
    %c0_i32_0 = arith.constant 0 : i32
    %c0_i32_1 = arith.constant 0 : i32
    return %c0_i32, %c0_i32_0 : i32, i32
  }
  func.func @transform_9(%arg0: i32) -> (i32, i32) {
    %c0_i32 = arith.constant 0 : i32
    %c0_i32_0 = arith.constant 0 : i32
    return %c0_i32, %arg0 : i32, i32
  }
}

</mosaic_0001>

<llo_original>
// kernel: neural_network_forward.1
$region0: #{neural_network_forward.1}
  #allocation0 [shape = 'u32[]', space=smem, size = 0x4, offset = 0x4, fixed_abs, tag = 'smem constant byte address 0x4 - core index']
  #allocation1 [shape = 'u32[144,128]{1,0:T(1,128)}', space=vmem, size = 0x12000, scoped, tag = 'internal scratch']
  #allocation2 [shape = 'f32[1,1]{1,0:T(1,128)S(1)}', space=vmem, size = 0x200, scoped, tag = 'scoped memory for neural_network_forward.1']
  %s0 = inlined_call_operand.vmem [shape: f32[256,44], index: 0, kind: input, shape index: {}]
  %s1 = inlined_call_operand.vmem [shape: bf16[44,128], index: 1, kind: input, shape index: {}]
  %s2 = inlined_call_operand.vmem [shape: f32[1,128], index: 2, kind: input, shape index: {}]
  %s3 = inlined_call_operand.vmem [shape: bf16[128,64], index: 3, kind: input, shape index: {}]
  %s4 = inlined_call_operand.vmem [shape: f32[1,64], index: 4, kind: input, shape index: {}]
  %s5 = inlined_call_operand.vmem [shape: bf16[64,32], index: 5, kind: input, shape index: {}]
  %s6 = inlined_call_operand.vmem [shape: f32[1,32], index: 6, kind: input, shape index: {}]
  %s7 = inlined_call_operand.vmem [shape: bf16[1,32], index: 7, kind: input, shape index: {}]
  %s8 = inlined_call_operand.<no memory space> [shape: f32[1,1], index: 8, kind: input, shape index: {}]
  %s9 = inlined_call_operand.vmem [shape: f32[1,256], index: 9, kind: output, shape index: {}]
  %s10 = sld [smem:[#allocation0]]
  $region46: #{neural_network_forward.1} parent=0
    _
  %s12 = ssub.s32 1, %s10
  %s13 = scalar_select 0, %s12, %s10
  %v14 = vstv %s8
  %15 = vst [vmem:[#allocation2] sm:$0x1] %v14
  // Predicated region
  $region2: #{neural_network_forward.1} parent=0 // pred_check
    _
  $region3: #{neural_network_forward.1} parent=0 // pred_check_branch
    %17 = sbr.rel (0) target = $region5
  $region4: #{neural_network_forward.1} parent=0 // pred_region
    _
  $region5: #{neural_network_forward.1} parent=0 // pred_fallthru
    _
  // Predicated region
  $region6: #{neural_network_forward.1} parent=0 // pred_check
    _
  $region7: #{neural_network_forward.1} parent=0 // pred_check_branch
    %19 = sbr.rel (0) target = $region9
  $region8: #{neural_network_forward.1} parent=0 // pred_region
    _
  $region9: #{neural_network_forward.1} parent=0 // pred_fallthru
    _
  // Predicated region
  $region10: #{neural_network_forward.1} parent=0 // pred_check
    _
  $region11: #{neural_network_forward.1} parent=0 // pred_check_branch
    %21 = sbr.rel (0) target = $region13
  $region12: #{neural_network_forward.1} parent=0 // pred_region
    _
  $region13: #{neural_network_forward.1} parent=0 // pred_fallthru
    _
  // Predicated region
  $region14: #{neural_network_forward.1} parent=0 // pred_check
    _
  $region15: #{neural_network_forward.1} parent=0 // pred_check_branch
    %23 = sbr.rel (0) target = $region17
  $region16: #{neural_network_forward.1} parent=0 // pred_region
    _
  $region17: #{neural_network_forward.1} parent=0 // pred_fallthru
    _
  // Predicated region
  $region18: #{neural_network_forward.1} parent=0 // pred_check
    _
  $region19: #{neural_network_forward.1} parent=0 // pred_check_branch
    %25 = sbr.rel (0) target = $region21
  $region20: #{neural_network_forward.1} parent=0 // pred_region
    _
  $region21: #{neural_network_forward.1} parent=0 // pred_fallthru
    _
  // Predicated region
  $region22: #{neural_network_forward.1} parent=0 // pred_check
    _
  $region23: #{neural_network_forward.1} parent=0 // pred_check_branch
    %27 = sbr.rel (0) target = $region25
  $region24: #{neural_network_forward.1} parent=0 // pred_region
    _
  $region25: #{neural_network_forward.1} parent=0 // pred_fallthru
    _
  // Predicated region
  $region26: #{neural_network_forward.1} parent=0 // pred_check
    _
  $region27: #{neural_network_forward.1} parent=0 // pred_check_branch
    %29 = sbr.rel (0) target = $region29
  $region28: #{neural_network_forward.1} parent=0 // pred_region
    _
  $region29: #{neural_network_forward.1} parent=0 // pred_fallthru
    _
  // Predicated region
  $region30: #{neural_network_forward.1} parent=0 // pred_check
    _
  $region31: #{neural_network_forward.1} parent=0 // pred_check_branch
    %31 = sbr.rel (0) target = $region33
  $region32: #{neural_network_forward.1} parent=0 // pred_region
    _
  $region33: #{neural_network_forward.1} parent=0 // pred_fallthru
    _
  // Predicated region
  $region34: #{neural_network_forward.1} parent=0 // pred_check
    _
  $region35: #{neural_network_forward.1} parent=0 // pred_check_branch
    %33 = sbr.rel (0) target = $region37
  $region36: #{neural_network_forward.1} parent=0 // pred_region
    _
  $region37: #{neural_network_forward.1} parent=0 // pred_fallthru
    _
  %v35 = vld [vmem:[%s0] sm:$0xff]
  %v36 = vld [vmem:[%s0 + $0x8] sm:$0xff]
  %v37 = vld [vmem:[%s0 + $0x10] sm:$0xff]
  %v38 = vld [vmem:[%s0 + $0x18] sm:$0xff]
  %v39 = vld [vmem:[%s0 + $0x20] sm:$0xff]
  %v40 = vld [vmem:[%s0 + $0x28] sm:$0xff]
  %v41 = vld [vmem:[%s0 + $0x30] sm:$0xff]
  %v42 = vld [vmem:[%s0 + $0x38] sm:$0xff]
  %v43 = vld [vmem:[%s0 + $0x40] sm:$0xff]
  %v44 = vld [vmem:[%s0 + $0x48] sm:$0xff]
  %v45 = vld [vmem:[%s0 + $0x50] sm:$0xff]
  %v46 = vld [vmem:[%s0 + $0x58] sm:$0xff]
  %v47 = vld [vmem:[%s0 + $0x60] sm:$0xff]
  %v48 = vld [vmem:[%s0 + $0x68] sm:$0xff]
  %v49 = vld [vmem:[%s0 + $0x70] sm:$0xff]
  %v50 = vld [vmem:[%s0 + $0x78] sm:$0xff]
  %v51 = vld [vmem:[%s0 + $0x80] sm:$0xff]
  %v52 = vld [vmem:[%s0 + $0x88] sm:$0xff]
  %v53 = vld [vmem:[%s0 + $0x90] sm:$0xff]
  %v54 = vld [vmem:[%s0 + $0x98] sm:$0xff]
  %v55 = vld [vmem:[%s0 + $0xa0] sm:$0xff]
  %v56 = vld [vmem:[%s0 + $0xa8] sm:$0xff]
  %v57 = vld [vmem:[%s0 + $0xb0] sm:$0xff]
  %v58 = vld [vmem:[%s0 + $0xb8] sm:$0xff]
  %v59 = vld [vmem:[%s0 + $0xc0] sm:$0xff]
  %v60 = vld [vmem:[%s0 + $0xc8] sm:$0xff]
  %v61 = vld [vmem:[%s0 + $0xd0] sm:$0xff]
  %v62 = vld [vmem:[%s0 + $0xd8] sm:$0xff]
  %v63 = vld [vmem:[%s0 + $0xe0] sm:$0xff]
  %v64 = vld [vmem:[%s0 + $0xe8] sm:$0xff]
  %v65 = vld [vmem:[%s0 + $0xf0] sm:$0xff]
  %v66 = vld [vmem:[%s0 + $0xf8] sm:$0xff]
  %v67 = vpack.c.bf16 %v36, %v35
  %v68 = vpack.c.bf16 %v38, %v37
  %v69 = vpack.c.bf16 %v40, %v39
  %v70 = vpack.c.bf16 %v42, %v41
  %v71 = vpack.c.bf16 %v44, %v43
  %v72 = vpack.c.bf16 %v46, %v45
  %v73 = vpack.c.bf16 %v48, %v47
  %v74 = vpack.c.bf16 %v50, %v49
  %v75 = vpack.c.bf16 %v52, %v51
  %v76 = vpack.c.bf16 %v54, %v53
  %v77 = vpack.c.bf16 %v56, %v55
  %v78 = vpack.c.bf16 %v58, %v57
  %v79 = vpack.c.bf16 %v60, %v59
  %v80 = vpack.c.bf16 %v62, %v61
  %v81 = vpack.c.bf16 %v64, %v63
  %v82 = vpack.c.bf16 %v66, %v65
  %v83 = vld [vmem:[%s1] sm:$0xf]
  %v84 = vld [vmem:[%s1 + $0x4] sm:$0xf]
  %v85 = vld [vmem:[%s1 + $0x8] sm:$0xf]
  %v86 = vld [vmem:[%s1 + $0xc] sm:$0xf]
  %v87 = vld [vmem:[%s1 + $0x10] sm:$0xf]
  %v88 = vld [vmem:[%s1 + $0x14] sm:$0x3]
  %v89 = vld [vmem:[%s2] sm:$0x1]
  %v91 = vlaneseq
  %v92 = vshrl.u32 %v91, 7
  %v93 = vsub.s32 0, %v92
  %v94 = vrot.slane %v89, %v93
  %v102 = vunpack.c.l.b16 %v83
  %v103 = vunpack.c.l.b16 %v84
  %v104 = vunpack.c.l.b16 %v85
  %v105 = vunpack.c.l.b16 %v86
  %v106 = vunpack.c.l.b16 %v87
  %v107 = vunpack.c.l.b16 %v88
  %v108 = vpack.c.b16 %v103, %v102
  %v109 = vpack.c.b16 %v105, %v104
  %v110 = vpack.c.b16 %v107, %v106
  %vm113 = vcmask 359424
  %v115 = vsel %vm113, %v67, 0
  %v118 = vsel %vm113, %v68, 0
  %v121 = vsel %vm113, %v69, 0
  %v124 = vsel %vm113, %v70, 0
  %v127 = vsel %vm113, %v71, 0
  %v130 = vsel %vm113, %v72, 0
  %v133 = vsel %vm113, %v73, 0
  %v136 = vsel %vm113, %v74, 0
  %v139 = vsel %vm113, %v75, 0
  %v142 = vsel %vm113, %v76, 0
  %v145 = vsel %vm113, %v77, 0
  %v148 = vsel %vm113, %v78, 0
  %v151 = vsel %vm113, %v79, 0
  %v154 = vsel %vm113, %v80, 0
  %v157 = vsel %vm113, %v81, 0
  %v160 = vsel %vm113, %v82, 0
  %vm162 = vcmask 1045504
  %v164 = vsel %vm162, %v110, 0
  %166 = vmatprep.subr.bf16.mxu0 0
  %167 = vmatpush1.bf16.msra.mxu0 %v108
  %168 = vmatprep.subr.bf16.mxu0 0
  %169 = vmatpush1.bf16.msra.mxu0 %v109
  %170 = vmatprep.subr.bf16.mxu0 0
  %171 = vmatpush1.bf16.msra.mxu0 %v164
  %172 = vmatprep.subr.bf16.mxu0 0
  %173 = vmatpush1.bf16.msra.mxu0 0
  %174 = vmatprep.subr.bf16.mxu0 0
  %175 = vmatpush1.bf16.msra.mxu0 0
  %176 = vmatprep.subr.bf16.mxu0 0
  %177 = vmatpush1.bf16.msra.mxu0 0
  %178 = vmatprep.subr.bf16.mxu0 0
  %179 = vmatpush1.bf16.msra.mxu0 0
  %180 = vmatprep.subr.bf16.mxu0 0
  %181 = vmatpush1.bf16.msra.mxu0 0
  %182 = vmatprep.subr.bf16.mxu0 0
  %183 = vmatpush1.bf16.msra.mxu0 0
  %184 = vmatprep.subr.bf16.mxu0 0
  %185 = vmatpush1.bf16.msra.mxu0 0
  %186 = vmatprep.subr.bf16.mxu0 0
  %187 = vmatpush1.bf16.msra.mxu0 0
  %188 = vmatprep.subr.bf16.mxu0 0
  %189 = vmatpush1.bf16.msra.mxu0 0
  %190 = vmatprep.subr.bf16.mxu0 0
  %191 = vmatpush1.bf16.msra.mxu0 0
  %192 = vmatprep.subr.bf16.mxu0 0
  %193 = vmatpush1.bf16.msra.mxu0 0
  %194 = vmatprep.subr.bf16.mxu0 0
  %195 = vmatpush1.bf16.msra.mxu0 0
  %196 = vmatprep.subr.bf16.mxu0 0
  %197 = vmatpush1.bf16.msra.mxu0 0
  %198 = vmatprep.mubr.bf16.mxu0 0
  %199 = vmatmul.mubr.bf16.gmra.mrb[0].mxu0 %v115
  %v200 = vpop.f32.mrb[0].mxu0
  %v201 = vadd.f32 %v94, %v200
  %v202 = vpop.f32.mrb[0].mxu0
  %v203 = vpop.f32.mrb[0].mxu0
  %v204 = vadd.f32 %v94, %v203
  %v205 = vpop.f32.mrb[0].mxu0
  %206 = vmatprep.mubr.bf16.mxu0 0
  %207 = vmatmul.mubr.bf16.gmra.mrb[0].mxu0 %v118
  %v208 = vpop.f32.mrb[0].mxu0
  %v209 = vadd.f32 %v94, %v208
  %v210 = vpop.f32.mrb[0].mxu0
  %v211 = vpop.f32.mrb[0].mxu0
  %v212 = vadd.f32 %v94, %v211
  %v213 = vpop.f32.mrb[0].mxu0
  %214 = vmatprep.mubr.bf16.mxu0 0
  %215 = vmatmul.mubr.bf16.gmra.mrb[0].mxu0 %v121
  %v216 = vpop.f32.mrb[0].mxu0
  %v217 = vadd.f32 %v94, %v216
  %v218 = vpop.f32.mrb[0].mxu0
  %v219 = vpop.f32.mrb[0].mxu0
  %v220 = vadd.f32 %v94, %v219
  %v221 = vpop.f32.mrb[0].mxu0
  %222 = vmatprep.mubr.bf16.mxu0 0
  %223 = vmatmul.mubr.bf16.gmra.mrb[0].mxu0 %v124
  %v224 = vpop.f32.mrb[0].mxu0
  %v225 = vadd.f32 %v94, %v224
  %v226 = vpop.f32.mrb[0].mxu0
  %v227 = vpop.f32.mrb[0].mxu0
  %v228 = vadd.f32 %v94, %v227
  %v229 = vpop.f32.mrb[0].mxu0
  %230 = vmatprep.mubr.bf16.mxu0 0
  %231 = vmatmul.mubr.bf16.gmra.mrb[0].mxu0 %v127
  %v232 = vpop.f32.mrb[0].mxu0
  %v233 = vadd.f32 %v94, %v232
  %v234 = vpop.f32.mrb[0].mxu0
  %v235 = vpop.f32.mrb[0].mxu0
  %v236 = vadd.f32 %v94, %v235
  %v237 = vpop.f32.mrb[0].mxu0
  %238 = vmatprep.mubr.bf16.mxu0 0
  %239 = vmatmul.mubr.bf16.gmra.mrb[0].mxu0 %v130
  %v240 = vpop.f32.mrb[0].mxu0
  %v241 = vadd.f32 %v94, %v240
  %v242 = vpop.f32.mrb[0].mxu0
  %v243 = vpop.f32.mrb[0].mxu0
  %v244 = vadd.f32 %v94, %v243
  %v245 = vpop.f32.mrb[0].mxu0
  %246 = vmatprep.mubr.bf16.mxu0 0
  %247 = vmatmul.mubr.bf16.gmra.mrb[0].mxu0 %v133
  %v248 = vpop.f32.mrb[0].mxu0
  %v249 = vadd.f32 %v94, %v248
  %v250 = vpop.f32.mrb[0].mxu0
  %v251 = vpop.f32.mrb[0].mxu0
  %v252 = vadd.f32 %v94, %v251
  %v253 = vpop.f32.mrb[0].mxu0
  %254 = vmatprep.mubr.bf16.mxu0 0
  %255 = vmatmul.mubr.bf16.gmra.mrb[0].mxu0 %v136
  %v256 = vpop.f32.mrb[0].mxu0
  %v257 = vadd.f32 %v94, %v256
  %v258 = vpop.f32.mrb[0].mxu0
  %v259 = vpop.f32.mrb[0].mxu0
  %v260 = vadd.f32 %v94, %v259
  %v261 = vpop.f32.mrb[0].mxu0
  %262 = vmatprep.mubr.bf16.mxu0 0
  %263 = vmatmul.mubr.bf16.gmra.mrb[0].mxu0 %v139
  %v264 = vpop.f32.mrb[0].mxu0
  %v265 = vadd.f32 %v94, %v264
  %v266 = vpop.f32.mrb[0].mxu0
  %v267 = vpop.f32.mrb[0].mxu0
  %v268 = vadd.f32 %v94, %v267
  %v269 = vpop.f32.mrb[0].mxu0
  %270 = vmatprep.mubr.bf16.mxu0 0
  %271 = vmatmul.mubr.bf16.gmra.mrb[0].mxu0 %v142
  %v272 = vpop.f32.mrb[0].mxu0
  %v273 = vadd.f32 %v94, %v272
  %v274 = vpop.f32.mrb[0].mxu0
  %v275 = vpop.f32.mrb[0].mxu0
  %v276 = vadd.f32 %v94, %v275
  %v277 = vpop.f32.mrb[0].mxu0
  %278 = vmatprep.mubr.bf16.mxu0 0
  %279 = vmatmul.mubr.bf16.gmra.mrb[0].mxu0 %v145
  %v280 = vpop.f32.mrb[0].mxu0
  %v281 = vadd.f32 %v94, %v280
  %v282 = vpop.f32.mrb[0].mxu0
  %v283 = vpop.f32.mrb[0].mxu0
  %v284 = vadd.f32 %v94, %v283
  %v285 = vpop.f32.mrb[0].mxu0
  %286 = vmatprep.mubr.bf16.mxu0 0
  %287 = vmatmul.mubr.bf16.gmra.mrb[0].mxu0 %v148
  %v288 = vpop.f32.mrb[0].mxu0
  %v289 = vadd.f32 %v94, %v288
  %v290 = vpop.f32.mrb[0].mxu0
  %v291 = vpop.f32.mrb[0].mxu0
  %v292 = vadd.f32 %v94, %v291
  %v293 = vpop.f32.mrb[0].mxu0
  %294 = vmatprep.mubr.bf16.mxu0 0
  %295 = vmatmul.mubr.bf16.gmra.mrb[0].mxu0 %v151
  %v296 = vpop.f32.mrb[0].mxu0
  %v297 = vadd.f32 %v94, %v296
  %v298 = vpop.f32.mrb[0].mxu0
  %v299 = vpop.f32.mrb[0].mxu0
  %v300 = vadd.f32 %v94, %v299
  %v301 = vpop.f32.mrb[0].mxu0
  %302 = vmatprep.mubr.bf16.mxu0 0
  %303 = vmatmul.mubr.bf16.gmra.mrb[0].mxu0 %v154
  %v304 = vpop.f32.mrb[0].mxu0
  %v305 = vadd.f32 %v94, %v304
  %v306 = vpop.f32.mrb[0].mxu0
  %v307 = vpop.f32.mrb[0].mxu0
  %v308 = vadd.f32 %v94, %v307
  %v309 = vpop.f32.mrb[0].mxu0
  %310 = vmatprep.mubr.bf16.mxu0 0
  %311 = vmatmul.mubr.bf16.gmra.mrb[0].mxu0 %v157
  %v312 = vpop.f32.mrb[0].mxu0
  %v313 = vadd.f32 %v94, %v312
  %v314 = vpop.f32.mrb[0].mxu0
  %v315 = vpop.f32.mrb[0].mxu0
  %v316 = vadd.f32 %v94, %v315
  %v317 = vpop.f32.mrb[0].mxu0
  %318 = vmatprep.mubr.bf16.mxu0 0
  %319 = vmatmul.mubr.bf16.gmra.mrb[0].mxu0 %v160
  %v320 = vpop.f32.mrb[0].mxu0
  %v321 = vadd.f32 %v94, %v320
  %v322 = vpop.f32.mrb[0].mxu0
  %v323 = vpop.f32.mrb[0].mxu0
  %v324 = vadd.f32 %v94, %v323
  %v325 = vpop.f32.mrb[0].mxu0
  %326 = vdwg.mxu0
  %v327 = vmul.f32 %v201, 0.01
  %v328 = vmul.f32 %v204, 0.01
  %v329 = vmul.f32 %v209, 0.01
  %v330 = vmul.f32 %v212, 0.01
  %v331 = vmul.f32 %v217, 0.01
  %v332 = vmul.f32 %v220, 0.01
  %v333 = vmul.f32 %v225, 0.01
  %v334 = vmul.f32 %v228, 0.01
  %v335 = vmul.f32 %v233, 0.01
  %v336 = vmul.f32 %v236, 0.01
  %v337 = vmul.f32 %v241, 0.01
  %v338 = vmul.f32 %v244, 0.01
  %v339 = vmul.f32 %v249, 0.01
  %v340 = vmul.f32 %v252, 0.01
  %v341 = vmul.f32 %v257, 0.01
  %v342 = vmul.f32 %v260, 0.01
  %v343 = vmul.f32 %v265, 0.01
  %v344 = vmul.f32 %v268, 0.01
  %v345 = vmul.f32 %v273, 0.01
  %v346 = vmul.f32 %v276, 0.01
  %v347 = vmul.f32 %v281, 0.01
  %v348 = vmul.f32 %v284, 0.01
  %v349 = vmul.f32 %v289, 0.01
  %v350 = vmul.f32 %v292, 0.01
  %v351 = vmul.f32 %v297, 0.01
  %v352 = vmul.f32 %v300, 0.01
  %v353 = vmul.f32 %v305, 0.01
  %v354 = vmul.f32 %v308, 0.01
  %v355 = vmul.f32 %v313, 0.01
  %v356 = vmul.f32 %v316, 0.01
  %v357 = vmul.f32 %v321, 0.01
  %v358 = vmul.f32 %v324, 0.01
  %v359 = vmax.f32 %v201, %v327
  %v360 = vmax.f32 %v204, %v328
  %v361 = vmax.f32 %v209, %v329
  %v362 = vmax.f32 %v212, %v330
  %v363 = vmax.f32 %v217, %v331
  %v364 = vmax.f32 %v220, %v332
  %v365 = vmax.f32 %v225, %v333
  %v366 = vmax.f32 %v228, %v334
  %v367 = vmax.f32 %v233, %v335
  %v368 = vmax.f32 %v236, %v336
  %v369 = vmax.f32 %v241, %v337
  %v370 = vmax.f32 %v244, %v338
  %v371 = vmax.f32 %v249, %v339
  %v372 = vmax.f32 %v252, %v340
  %v373 = vmax.f32 %v257, %v341
  %v374 = vmax.f32 %v260, %v342
  %v375 = vmax.f32 %v265, %v343
  %v376 = vmax.f32 %v268, %v344
  %v377 = vmax.f32 %v273, %v345
  %v378 = vmax.f32 %v276, %v346
  %v379 = vmax.f32 %v281, %v347
  %v380 = vmax.f32 %v284, %v348
  %v381 = vmax.f32 %v289, %v349
  %v382 = vmax.f32 %v292, %v350
  %v383 = vmax.f32 %v297, %v351
  %v384 = vmax.f32 %v300, %v352
  %v385 = vmax.f32 %v305, %v353
  %v386 = vmax.f32 %v308, %v354
  %v387 = vmax.f32 %v313, %v355
  %v388 = vmax.f32 %v316, %v356
  %v389 = vmax.f32 %v321, %v357
  %v390 = vmax.f32 %v324, %v358
  %v391 = vpack.c.bf16 %v360, %v359
  %v392 = vpack.c.bf16 %v362, %v361
  %v393 = vpack.c.bf16 %v364, %v363
  %v394 = vpack.c.bf16 %v366, %v365
  %v395 = vpack.c.bf16 %v368, %v367
  %v396 = vpack.c.bf16 %v370, %v369
  %v397 = vpack.c.bf16 %v372, %v371
  %v398 = vpack.c.bf16 %v374, %v373
  %v399 = vpack.c.bf16 %v376, %v375
  %v400 = vpack.c.bf16 %v378, %v377
  %v401 = vpack.c.bf16 %v380, %v379
  %v402 = vpack.c.bf16 %v382, %v381
  %v403 = vpack.c.bf16 %v384, %v383
  %v404 = vpack.c.bf16 %v386, %v385
  %v405 = vpack.c.bf16 %v388, %v387
  %v406 = vpack.c.bf16 %v390, %v389
  %v407 = vld [vmem:[%s3] sm:$0xf]
  %v408 = vld [vmem:[%s3 + $0x4] sm:$0xf]
  %v409 = vld [vmem:[%s3 + $0x8] sm:$0xf]
  %v410 = vld [vmem:[%s3 + $0xc] sm:$0xf]
  %v411 = vld [vmem:[%s3 + $0x10] sm:$0xf]
  %v412 = vld [vmem:[%s3 + $0x14] sm:$0xf]
  %v413 = vld [vmem:[%s3 + $0x18] sm:$0xf]
  %v414 = vld [vmem:[%s3 + $0x1c] sm:$0xf]
  %v415 = vld [vmem:[%s3 + $0x20] sm:$0xf]
  %v416 = vld [vmem:[%s3 + $0x24] sm:$0xf]
  %v417 = vld [vmem:[%s3 + $0x28] sm:$0xf]
  %v418 = vld [vmem:[%s3 + $0x2c] sm:$0xf]
  %v419 = vld [vmem:[%s3 + $0x30] sm:$0xf]
  %v420 = vld [vmem:[%s3 + $0x34] sm:$0xf]
  %v421 = vld [vmem:[%s3 + $0x38] sm:$0xf]
  %v422 = vld [vmem:[%s3 + $0x3c] sm:$0xf]
  %v423 = vld [vmem:[%s4] sm:$0x1]
  %v425 = vlaneseq
  %v426 = vshrl.u32 %v425, 7
  %v427 = vsub.s32 0, %v426
  %v428 = vrot.slane %v423, %v427
  %v446 = vunpack.c.l.b16 %v407
  %v447 = vunpack.c.l.b16 %v408
  %v448 = vunpack.c.l.b16 %v409
  %v449 = vunpack.c.l.b16 %v410
  %v450 = vunpack.c.l.b16 %v411
  %v451 = vunpack.c.l.b16 %v412
  %v452 = vunpack.c.l.b16 %v413
  %v453 = vunpack.c.l.b16 %v414
  %v454 = vunpack.c.l.b16 %v415
  %v455 = vunpack.c.l.b16 %v416
  %v456 = vunpack.c.l.b16 %v417
  %v457 = vunpack.c.l.b16 %v418
  %v458 = vunpack.c.l.b16 %v419
  %v459 = vunpack.c.l.b16 %v420
  %v460 = vunpack.c.l.b16 %v421
  %v461 = vunpack.c.l.b16 %v422
  %v462 = vpack.c.b16 %v447, %v446
  %v463 = vpack.c.b16 %v449, %v448
  %v464 = vpack.c.b16 %v451, %v450
  %v465 = vpack.c.b16 %v453, %v452
  %v466 = vpack.c.b16 %v455, %v454
  %v467 = vpack.c.b16 %v457, %v456
  %v468 = vpack.c.b16 %v459, %v458
  %v469 = vpack.c.b16 %v461, %v460
  %478 = vmatprep.subr.bf16.mxu0 0
  %479 = vmatpush1.bf16.msra.mxu0 %v462
  %480 = vmatprep.subr.bf16.mxu0 0
  %481 = vmatpush1.bf16.msra.mxu0 %v463
  %482 = vmatprep.subr.bf16.mxu0 0
  %483 = vmatpush1.bf16.msra.mxu0 %v464
  %484 = vmatprep.subr.bf16.mxu0 0
  %485 = vmatpush1.bf16.msra.mxu0 %v465
  %486 = vmatprep.subr.bf16.mxu0 0
  %487 = vmatpush1.bf16.msra.mxu0 %v466
  %488 = vmatprep.subr.bf16.mxu0 0
  %489 = vmatpush1.bf16.msra.mxu0 %v467
  %490 = vmatprep.subr.bf16.mxu0 0
  %491 = vmatpush1.bf16.msra.mxu0 %v468
  %492 = vmatprep.subr.bf16.mxu0 0
  %493 = vmatpush1.bf16.msra.mxu0 %v469
  %494 = vmatprep.subr.bf16.mxu0 0
  %495 = vmatpush1.bf16.msra.mxu0 0
  %496 = vmatprep.subr.bf16.mxu0 0
  %497 = vmatpush1.bf16.msra.mxu0 0
  %498 = vmatprep.subr.bf16.mxu0 0
  %499 = vmatpush1.bf16.msra.mxu0 0
  %500 = vmatprep.subr.bf16.mxu0 0
  %501 = vmatpush1.bf16.msra.mxu0 0
  %502 = vmatprep.subr.bf16.mxu0 0
  %503 = vmatpush1.bf16.msra.mxu0 0
  %504 = vmatprep.subr.bf16.mxu0 0
  %505 = vmatpush1.bf16.msra.mxu0 0
  %506 = vmatprep.subr.bf16.mxu0 0
  %507 = vmatpush1.bf16.msra.mxu0 0
  %508 = vmatprep.subr.bf16.mxu0 0
  %509 = vmatpush1.bf16.msra.mxu0 0
  %510 = vmatprep.mubr.bf16.mxu0 0
  %511 = vmatmul.mubr.bf16.gmra.mrb[0].mxu0 %v391
  %v512 = vpop.f32.mrb[0].mxu0
  %v513 = vadd.f32 %v428, %v512
  %v514 = vpop.f32.mrb[0].mxu0
  %v515 = vpop.f32.mrb[0].mxu0
  %v516 = vadd.f32 %v428, %v515
  %v517 = vpop.f32.mrb[0].mxu0
  %518 = vmatprep.mubr.bf16.mxu0 0
  %519 = vmatmul.mubr.bf16.gmra.mrb[0].mxu0 %v392
  %v520 = vpop.f32.mrb[0].mxu0
  %v521 = vadd.f32 %v428, %v520
  %v522 = vpop.f32.mrb[0].mxu0
  %v523 = vpop.f32.mrb[0].mxu0
  %v524 = vadd.f32 %v428, %v523
  %v525 = vpop.f32.mrb[0].mxu0
  %526 = vmatprep.mubr.bf16.mxu0 0
  %527 = vmatmul.mubr.bf16.gmra.mrb[0].mxu0 %v393
  %v528 = vpop.f32.mrb[0].mxu0
  %v529 = vadd.f32 %v428, %v528
  %v530 = vpop.f32.mrb[0].mxu0
  %v531 = vpop.f32.mrb[0].mxu0
  %v532 = vadd.f32 %v428, %v531
  %v533 = vpop.f32.mrb[0].mxu0
  %534 = vmatprep.mubr.bf16.mxu0 0
  %535 = vmatmul.mubr.bf16.gmra.mrb[0].mxu0 %v394
  %v536 = vpop.f32.mrb[0].mxu0
  %v537 = vadd.f32 %v428, %v536
  %v538 = vpop.f32.mrb[0].mxu0
  %v539 = vpop.f32.mrb[0].mxu0
  %v540 = vadd.f32 %v428, %v539
  %v541 = vpop.f32.mrb[0].mxu0
  %542 = vmatprep.mubr.bf16.mxu0 0
  %543 = vmatmul.mubr.bf16.gmra.mrb[0].mxu0 %v395
  %v544 = vpop.f32.mrb[0].mxu0
  %v545 = vadd.f32 %v428, %v544
  %v546 = vpop.f32.mrb[0].mxu0
  %v547 = vpop.f32.mrb[0].mxu0
  %v548 = vadd.f32 %v428, %v547
  %v549 = vpop.f32.mrb[0].mxu0
  %550 = vmatprep.mubr.bf16.mxu0 0
  %551 = vmatmul.mubr.bf16.gmra.mrb[0].mxu0 %v396
  %v552 = vpop.f32.mrb[0].mxu0
  %v553 = vadd.f32 %v428, %v552
  %v554 = vpop.f32.mrb[0].mxu0
  %v555 = vpop.f32.mrb[0].mxu0
  %v556 = vadd.f32 %v428, %v555
  %v557 = vpop.f32.mrb[0].mxu0
  %558 = vmatprep.mubr.bf16.mxu0 0
  %559 = vmatmul.mubr.bf16.gmra.mrb[0].mxu0 %v397
  %v560 = vpop.f32.mrb[0].mxu0
  %v561 = vadd.f32 %v428, %v560
  %v562 = vpop.f32.mrb[0].mxu0
  %v563 = vpop.f32.mrb[0].mxu0
  %v564 = vadd.f32 %v428, %v563
  %v565 = vpop.f32.mrb[0].mxu0
  %566 = vmatprep.mubr.bf16.mxu0 0
  %567 = vmatmul.mubr.bf16.gmra.mrb[0].mxu0 %v398
  %v568 = vpop.f32.mrb[0].mxu0
  %v569 = vadd.f32 %v428, %v568
  %v570 = vpop.f32.mrb[0].mxu0
  %v571 = vpop.f32.mrb[0].mxu0
  %v572 = vadd.f32 %v428, %v571
  %v573 = vpop.f32.mrb[0].mxu0
  %574 = vmatprep.mubr.bf16.mxu0 0
  %575 = vmatmul.mubr.bf16.gmra.mrb[0].mxu0 %v399
  %v576 = vpop.f32.mrb[0].mxu0
  %v577 = vadd.f32 %v428, %v576
  %v578 = vpop.f32.mrb[0].mxu0
  %v579 = vpop.f32.mrb[0].mxu0
  %v580 = vadd.f32 %v428, %v579
  %v581 = vpop.f32.mrb[0].mxu0
  %582 = vmatprep.mubr.bf16.mxu0 0
  %583 = vmatmul.mubr.bf16.gmra.mrb[0].mxu0 %v400
  %v584 = vpop.f32.mrb[0].mxu0
  %v585 = vadd.f32 %v428, %v584
  %v586 = vpop.f32.mrb[0].mxu0
  %v587 = vpop.f32.mrb[0].mxu0
  %v588 = vadd.f32 %v428, %v587
  %v589 = vpop.f32.mrb[0].mxu0
  %590 = vmatprep.mubr.bf16.mxu0 0
  %591 = vmatmul.mubr.bf16.gmra.mrb[0].mxu0 %v401
  %v592 = vpop.f32.mrb[0].mxu0
  %v593 = vadd.f32 %v428, %v592
  %v594 = vpop.f32.mrb[0].mxu0
  %v595 = vpop.f32.mrb[0].mxu0
  %v596 = vadd.f32 %v428, %v595
  %v597 = vpop.f32.mrb[0].mxu0
  %598 = vmatprep.mubr.bf16.mxu0 0
  %599 = vmatmul.mubr.bf16.gmra.mrb[0].mxu0 %v402
  %v600 = vpop.f32.mrb[0].mxu0
  %v601 = vadd.f32 %v428, %v600
  %v602 = vpop.f32.mrb[0].mxu0
  %v603 = vpop.f32.mrb[0].mxu0
  %v604 = vadd.f32 %v428, %v603
  %v605 = vpop.f32.mrb[0].mxu0
  %606 = vmatprep.mubr.bf16.mxu0 0
  %607 = vmatmul.mubr.bf16.gmra.mrb[0].mxu0 %v403
  %v608 = vpop.f32.mrb[0].mxu0
  %v609 = vadd.f32 %v428, %v608
  %v610 = vpop.f32.mrb[0].mxu0
  %v611 = vpop.f32.mrb[0].mxu0
  %v612 = vadd.f32 %v428, %v611
  %v613 = vpop.f32.mrb[0].mxu0
  %614 = vmatprep.mubr.bf16.mxu0 0
  %615 = vmatmul.mubr.bf16.gmra.mrb[0].mxu0 %v404
  %v616 = vpop.f32.mrb[0].mxu0
  %v617 = vadd.f32 %v428, %v616
  %v618 = vpop.f32.mrb[0].mxu0
  %v619 = vpop.f32.mrb[0].mxu0
  %v620 = vadd.f32 %v428, %v619
  %v621 = vpop.f32.mrb[0].mxu0
  %622 = vmatprep.mubr.bf16.mxu0 0
  %623 = vmatmul.mubr.bf16.gmra.mrb[0].mxu0 %v405
  %v624 = vpop.f32.mrb[0].mxu0
  %v625 = vadd.f32 %v428, %v624
  %v626 = vpop.f32.mrb[0].mxu0
  %v627 = vpop.f32.mrb[0].mxu0
  %v628 = vadd.f32 %v428, %v627
  %v629 = vpop.f32.mrb[0].mxu0
  %630 = vmatprep.mubr.bf16.mxu0 0
  %631 = vmatmul.mubr.bf16.gmra.mrb[0].mxu0 %v406
  %v632 = vpop.f32.mrb[0].mxu0
  %v633 = vadd.f32 %v428, %v632
  %v634 = vpop.f32.mrb[0].mxu0
  %v635 = vpop.f32.mrb[0].mxu0
  %v636 = vadd.f32 %v428, %v635
  %v637 = vpop.f32.mrb[0].mxu0
  %638 = vdwg.mxu0
  %v639 = vmul.f32 %v513, 0.01
  %v640 = vmul.f32 %v516, 0.01
  %v641 = vmul.f32 %v521, 0.01
  %v642 = vmul.f32 %v524, 0.01
  %v643 = vmul.f32 %v529, 0.01
  %v644 = vmul.f32 %v532, 0.01
  %v645 = vmul.f32 %v537, 0.01
  %v646 = vmul.f32 %v540, 0.01
  %v647 = vmul.f32 %v545, 0.01
  %v648 = vmul.f32 %v548, 0.01
  %v649 = vmul.f32 %v553, 0.01
  %v650 = vmul.f32 %v556, 0.01
  %v651 = vmul.f32 %v561, 0.01
  %v652 = vmul.f32 %v564, 0.01
  %v653 = vmul.f32 %v569, 0.01
  %v654 = vmul.f32 %v572, 0.01
  %v655 = vmul.f32 %v577, 0.01
  %v656 = vmul.f32 %v580, 0.01
  %v657 = vmul.f32 %v585, 0.01
  %v658 = vmul.f32 %v588, 0.01
  %v659 = vmul.f32 %v593, 0.01
  %v660 = vmul.f32 %v596, 0.01
  %v661 = vmul.f32 %v601, 0.01
  %v662 = vmul.f32 %v604, 0.01
  %v663 = vmul.f32 %v609, 0.01
  %v664 = vmul.f32 %v612, 0.01
  %v665 = vmul.f32 %v617, 0.01
  %v666 = vmul.f32 %v620, 0.01
  %v667 = vmul.f32 %v625, 0.01
  %v668 = vmul.f32 %v628, 0.01
  %v669 = vmul.f32 %v633, 0.01
  %v670 = vmul.f32 %v636, 0.01
  %v671 = vmax.f32 %v513, %v639
  %v672 = vmax.f32 %v516, %v640
  %v673 = vmax.f32 %v521, %v641
  %v674 = vmax.f32 %v524, %v642
  %v675 = vmax.f32 %v529, %v643
  %v676 = vmax.f32 %v532, %v644
  %v677 = vmax.f32 %v537, %v645
  %v678 = vmax.f32 %v540, %v646
  %v679 = vmax.f32 %v545, %v647
  %v680 = vmax.f32 %v548, %v648
  %v681 = vmax.f32 %v553, %v649
  %v682 = vmax.f32 %v556, %v650
  %v683 = vmax.f32 %v561, %v651
  %v684 = vmax.f32 %v564, %v652
  %v685 = vmax.f32 %v569, %v653
  %v686 = vmax.f32 %v572, %v654
  %v687 = vmax.f32 %v577, %v655
  %v688 = vmax.f32 %v580, %v656
  %v689 = vmax.f32 %v585, %v657
  %v690 = vmax.f32 %v588, %v658
  %v691 = vmax.f32 %v593, %v659
  %v692 = vmax.f32 %v596, %v660
  %v693 = vmax.f32 %v601, %v661
  %v694 = vmax.f32 %v604, %v662
  %v695 = vmax.f32 %v609, %v663
  %v696 = vmax.f32 %v612, %v664
  %v697 = vmax.f32 %v617, %v665
  %v698 = vmax.f32 %v620, %v666
  %v699 = vmax.f32 %v625, %v667
  %v700 = vmax.f32 %v628, %v668
  %v701 = vmax.f32 %v633, %v669
  %v702 = vmax.f32 %v636, %v670
  %v703 = vpack.c.bf16 %v672, %v671
  %v704 = vpack.c.bf16 %v674, %v673
  %v705 = vpack.c.bf16 %v676, %v675
  %v706 = vpack.c.bf16 %v678, %v677
  %v707 = vpack.c.bf16 %v680, %v679
  %v708 = vpack.c.bf16 %v682, %v681
  %v709 = vpack.c.bf16 %v684, %v683
  %v710 = vpack.c.bf16 %v686, %v685
  %v711 = vpack.c.bf16 %v688, %v687
  %v712 = vpack.c.bf16 %v690, %v689
  %v713 = vpack.c.bf16 %v692, %v691
  %v714 = vpack.c.bf16 %v694, %v693
  %v715 = vpack.c.bf16 %v696, %v695
  %v716 = vpack.c.bf16 %v698, %v697
  %v717 = vpack.c.bf16 %v700, %v699
  %v718 = vpack.c.bf16 %v702, %v701
  %v719 = vld [vmem:[%s5] sm:$0xf]
  %v720 = vld [vmem:[%s5 + $0x4] sm:$0xf]
  %v721 = vld [vmem:[%s5 + $0x8] sm:$0xf]
  %v722 = vld [vmem:[%s5 + $0xc] sm:$0xf]
  %v723 = vld [vmem:[%s5 + $0x10] sm:$0xf]
  %v724 = vld [vmem:[%s5 + $0x14] sm:$0xf]
  %v725 = vld [vmem:[%s5 + $0x18] sm:$0xf]
  %v726 = vld [vmem:[%s5 + $0x1c] sm:$0xf]
  %v727 = vld [vmem:[%s6] sm:$0x1]
  %v729 = vlaneseq
  %v730 = vshrl.u32 %v729, 7
  %v731 = vsub.s32 0, %v730
  %v732 = vrot.slane %v727, %v731
  %v742 = vunpack.c.l.b16 %v719
  %v743 = vunpack.c.l.b16 %v720
  %v744 = vunpack.c.l.b16 %v721
  %v745 = vunpack.c.l.b16 %v722
  %v746 = vunpack.c.l.b16 %v723
  %v747 = vunpack.c.l.b16 %v724
  %v748 = vunpack.c.l.b16 %v725
  %v749 = vunpack.c.l.b16 %v726
  %v750 = vpack.c.b16 %v743, %v742
  %v751 = vpack.c.b16 %v745, %v744
  %v752 = vpack.c.b16 %v747, %v746
  %v753 = vpack.c.b16 %v749, %v748
  %vm758 = vcmask 523264
  %v760 = vsel %vm758, %v703, 0
  %v763 = vsel %vm758, %v704, 0
  %v766 = vsel %vm758, %v705, 0
  %v769 = vsel %vm758, %v706, 0
  %v772 = vsel %vm758, %v707, 0
  %v775 = vsel %vm758, %v708, 0
  %v778 = vsel %vm758, %v709, 0
  %v781 = vsel %vm758, %v710, 0
  %v784 = vsel %vm758, %v711, 0
  %v787 = vsel %vm758, %v712, 0
  %v790 = vsel %vm758, %v713, 0
  %v793 = vsel %vm758, %v714, 0
  %v796 = vsel %vm758, %v715, 0
  %v799 = vsel %vm758, %v716, 0
  %v802 = vsel %vm758, %v717, 0
  %v805 = vsel %vm758, %v718, 0
  %807 = vmatprep.subr.bf16.mxu0 0
  %808 = vmatpush1.bf16.msra.mxu0 %v750
  %809 = vmatprep.subr.bf16.mxu0 0
  %810 = vmatpush1.bf16.msra.mxu0 %v751
  %811 = vmatprep.subr.bf16.mxu0 0
  %812 = vmatpush1.bf16.msra.mxu0 %v752
  %813 = vmatprep.subr.bf16.mxu0 0
  %814 = vmatpush1.bf16.msra.mxu0 %v753
  %815 = vmatprep.subr.bf16.mxu0 0
  %816 = vmatpush1.bf16.msra.mxu0 0
  %817 = vmatprep.subr.bf16.mxu0 0
  %818 = vmatpush1.bf16.msra.mxu0 0
  %819 = vmatprep.subr.bf16.mxu0 0
  %820 = vmatpush1.bf16.msra.mxu0 0
  %821 = vmatprep.subr.bf16.mxu0 0
  %822 = vmatpush1.bf16.msra.mxu0 0
  %823 = vmatprep.subr.bf16.mxu0 0
  %824 = vmatpush1.bf16.msra.mxu0 0
  %825 = vmatprep.subr.bf16.mxu0 0
  %826 = vmatpush1.bf16.msra.mxu0 0
  %827 = vmatprep.subr.bf16.mxu0 0
  %828 = vmatpush1.bf16.msra.mxu0 0
  %829 = vmatprep.subr.bf16.mxu0 0
  %830 = vmatpush1.bf16.msra.mxu0 0
  %831 = vmatprep.subr.bf16.mxu0 0
  %832 = vmatpush1.bf16.msra.mxu0 0
  %833 = vmatprep.subr.bf16.mxu0 0
  %834 = vmatpush1.bf16.msra.mxu0 0
  %835 = vmatprep.subr.bf16.mxu0 0
  %836 = vmatpush1.bf16.msra.mxu0 0
  %837 = vmatprep.subr.bf16.mxu0 0
  %838 = vmatpush1.bf16.msra.mxu0 0
  %839 = vmatprep.mubr.bf16.mxu0 0
  %840 = vmatmul.mubr.bf16.gmra.mrb[0].mxu0 %v760
  %v841 = vpop.f32.mrb[0].mxu0
  %v842 = vadd.f32 %v732, %v841
  %v843 = vpop.f32.mrb[0].mxu0
  %v844 = vpop.f32.mrb[0].mxu0
  %v845 = vadd.f32 %v732, %v844
  %v846 = vpop.f32.mrb[0].mxu0
  %847 = vmatprep.mubr.bf16.mxu0 0
  %848 = vmatmul.mubr.bf16.gmra.mrb[0].mxu0 %v763
  %v849 = vpop.f32.mrb[0].mxu0
  %v850 = vadd.f32 %v732, %v849
  %v851 = vpop.f32.mrb[0].mxu0
  %v852 = vpop.f32.mrb[0].mxu0
  %v853 = vadd.f32 %v732, %v852
  %v854 = vpop.f32.mrb[0].mxu0
  %855 = vmatprep.mubr.bf16.mxu0 0
  %856 = vmatmul.mubr.bf16.gmra.mrb[0].mxu0 %v766
  %v857 = vpop.f32.mrb[0].mxu0
  %v858 = vadd.f32 %v732, %v857
  %v859 = vpop.f32.mrb[0].mxu0
  %v860 = vpop.f32.mrb[0].mxu0
  %v861 = vadd.f32 %v732, %v860
  %v862 = vpop.f32.mrb[0].mxu0
  %863 = vmatprep.mubr.bf16.mxu0 0
  %864 = vmatmul.mubr.bf16.gmra.mrb[0].mxu0 %v769
  %v865 = vpop.f32.mrb[0].mxu0
  %v866 = vadd.f32 %v732, %v865
  %v867 = vpop.f32.mrb[0].mxu0
  %v868 = vpop.f32.mrb[0].mxu0
  %v869 = vadd.f32 %v732, %v868
  %v870 = vpop.f32.mrb[0].mxu0
  %871 = vmatprep.mubr.bf16.mxu0 0
  %872 = vmatmul.mubr.bf16.gmra.mrb[0].mxu0 %v772
  %v873 = vpop.f32.mrb[0].mxu0
  %v874 = vadd.f32 %v732, %v873
  %v875 = vpop.f32.mrb[0].mxu0
  %v876 = vpop.f32.mrb[0].mxu0
  %v877 = vadd.f32 %v732, %v876
  %v878 = vpop.f32.mrb[0].mxu0
  %879 = vmatprep.mubr.bf16.mxu0 0
  %880 = vmatmul.mubr.bf16.gmra.mrb[0].mxu0 %v775
  %v881 = vpop.f32.mrb[0].mxu0
  %v882 = vadd.f32 %v732, %v881
  %v883 = vpop.f32.mrb[0].mxu0
  %v884 = vpop.f32.mrb[0].mxu0
  %v885 = vadd.f32 %v732, %v884
  %v886 = vpop.f32.mrb[0].mxu0
  %887 = vmatprep.mubr.bf16.mxu0 0
  %888 = vmatmul.mubr.bf16.gmra.mrb[0].mxu0 %v778
  %v889 = vpop.f32.mrb[0].mxu0
  %v890 = vadd.f32 %v732, %v889
  %v891 = vpop.f32.mrb[0].mxu0
  %v892 = vpop.f32.mrb[0].mxu0
  %v893 = vadd.f32 %v732, %v892
  %v894 = vpop.f32.mrb[0].mxu0
  %895 = vmatprep.mubr.bf16.mxu0 0
  %896 = vmatmul.mubr.bf16.gmra.mrb[0].mxu0 %v781
  %v897 = vpop.f32.mrb[0].mxu0
  %v898 = vadd.f32 %v732, %v897
  %v899 = vpop.f32.mrb[0].mxu0
  %v900 = vpop.f32.mrb[0].mxu0
  %v901 = vadd.f32 %v732, %v900
  %v902 = vpop.f32.mrb[0].mxu0
  %903 = vmatprep.mubr.bf16.mxu0 0
  %904 = vmatmul.mubr.bf16.gmra.mrb[0].mxu0 %v784
  %v905 = vpop.f32.mrb[0].mxu0
  %v906 = vadd.f32 %v732, %v905
  %v907 = vpop.f32.mrb[0].mxu0
  %v908 = vpop.f32.mrb[0].mxu0
  %v909 = vadd.f32 %v732, %v908
  %v910 = vpop.f32.mrb[0].mxu0
  %911 = vmatprep.mubr.bf16.mxu0 0
  %912 = vmatmul.mubr.bf16.gmra.mrb[0].mxu0 %v787
  %v913 = vpop.f32.mrb[0].mxu0
  %v914 = vadd.f32 %v732, %v913
  %v915 = vpop.f32.mrb[0].mxu0
  %v916 = vpop.f32.mrb[0].mxu0
  %v917 = vadd.f32 %v732, %v916
  %v918 = vpop.f32.mrb[0].mxu0
  %919 = vmatprep.mubr.bf16.mxu0 0
  %920 = vmatmul.mubr.bf16.gmra.mrb[0].mxu0 %v790
  %v921 = vpop.f32.mrb[0].mxu0
  %v922 = vadd.f32 %v732, %v921
  %v923 = vpop.f32.mrb[0].mxu0
  %v924 = vpop.f32.mrb[0].mxu0
  %v925 = vadd.f32 %v732, %v924
  %v926 = vpop.f32.mrb[0].mxu0
  %927 = vmatprep.mubr.bf16.mxu0 0
  %928 = vmatmul.mubr.bf16.gmra.mrb[0].mxu0 %v793
  %v929 = vpop.f32.mrb[0].mxu0
  %v930 = vadd.f32 %v732, %v929
  %v931 = vpop.f32.mrb[0].mxu0
  %v932 = vpop.f32.mrb[0].mxu0
  %v933 = vadd.f32 %v732, %v932
  %v934 = vpop.f32.mrb[0].mxu0
  %935 = vmatprep.mubr.bf16.mxu0 0
  %936 = vmatmul.mubr.bf16.gmra.mrb[0].mxu0 %v796
  %v937 = vpop.f32.mrb[0].mxu0
  %v938 = vadd.f32 %v732, %v937
  %v939 = vpop.f32.mrb[0].mxu0
  %v940 = vpop.f32.mrb[0].mxu0
  %v941 = vadd.f32 %v732, %v940
  %v942 = vpop.f32.mrb[0].mxu0
  %943 = vmatprep.mubr.bf16.mxu0 0
  %944 = vmatmul.mubr.bf16.gmra.mrb[0].mxu0 %v799
  %v945 = vpop.f32.mrb[0].mxu0
  %v946 = vadd.f32 %v732, %v945
  %v947 = vpop.f32.mrb[0].mxu0
  %v948 = vpop.f32.mrb[0].mxu0
  %v949 = vadd.f32 %v732, %v948
  %v950 = vpop.f32.mrb[0].mxu0
  %951 = vmatprep.mubr.bf16.mxu0 0
  %952 = vmatmul.mubr.bf16.gmra.mrb[0].mxu0 %v802
  %v953 = vpop.f32.mrb[0].mxu0
  %v954 = vadd.f32 %v732, %v953
  %v955 = vpop.f32.mrb[0].mxu0
  %v956 = vpop.f32.mrb[0].mxu0
  %v957 = vadd.f32 %v732, %v956
  %v958 = vpop.f32.mrb[0].mxu0
  %959 = vmatprep.mubr.bf16.mxu0 0
  %960 = vmatmul.mubr.bf16.gmra.mrb[0].mxu0 %v805
  %v961 = vpop.f32.mrb[0].mxu0
  %v962 = vadd.f32 %v732, %v961
  %v963 = vpop.f32.mrb[0].mxu0
  %v964 = vpop.f32.mrb[0].mxu0
  %v965 = vadd.f32 %v732, %v964
  %v966 = vpop.f32.mrb[0].mxu0
  %967 = vdwg.mxu0
  %v968 = vmul.f32 %v842, 0.01
  %v969 = vmul.f32 %v845, 0.01
  %v970 = vmul.f32 %v850, 0.01
  %v971 = vmul.f32 %v853, 0.01
  %v972 = vmul.f32 %v858, 0.01
  %v973 = vmul.f32 %v861, 0.01
  %v974 = vmul.f32 %v866, 0.01
  %v975 = vmul.f32 %v869, 0.01
  %v976 = vmul.f32 %v874, 0.01
  %v977 = vmul.f32 %v877, 0.01
  %v978 = vmul.f32 %v882, 0.01
  %v979 = vmul.f32 %v885, 0.01
  %v980 = vmul.f32 %v890, 0.01
  %v981 = vmul.f32 %v893, 0.01
  %v982 = vmul.f32 %v898, 0.01
  %v983 = vmul.f32 %v901, 0.01
  %v984 = vmul.f32 %v906, 0.01
  %v985 = vmul.f32 %v909, 0.01
  %v986 = vmul.f32 %v914, 0.01
  %v987 = vmul.f32 %v917, 0.01
  %v988 = vmul.f32 %v922, 0.01
  %v989 = vmul.f32 %v925, 0.01
  %v990 = vmul.f32 %v930, 0.01
  %v991 = vmul.f32 %v933, 0.01
  %v992 = vmul.f32 %v938, 0.01
  %v993 = vmul.f32 %v941, 0.01
  %v994 = vmul.f32 %v946, 0.01
  %v995 = vmul.f32 %v949, 0.01
  %v996 = vmul.f32 %v954, 0.01
  %v997 = vmul.f32 %v957, 0.01
  %v998 = vmul.f32 %v962, 0.01
  %v999 = vmul.f32 %v965, 0.01
  %v1000 = vmax.f32 %v842, %v968
  %v1001 = vmax.f32 %v845, %v969
  %v1002 = vmax.f32 %v850, %v970
  %v1003 = vmax.f32 %v853, %v971
  %v1004 = vmax.f32 %v858, %v972
  %v1005 = vmax.f32 %v861, %v973
  %v1006 = vmax.f32 %v866, %v974
  %v1007 = vmax.f32 %v869, %v975
  %v1008 = vmax.f32 %v874, %v976
  %v1009 = vmax.f32 %v877, %v977
  %v1010 = vmax.f32 %v882, %v978
  %v1011 = vmax.f32 %v885, %v979
  %v1012 = vmax.f32 %v890, %v980
  %v1013 = vmax.f32 %v893, %v981
  %v1014 = vmax.f32 %v898, %v982
  %v1015 = vmax.f32 %v901, %v983
  %v1016 = vmax.f32 %v906, %v984
  %v1017 = vmax.f32 %v909, %v985
  %v1018 = vmax.f32 %v914, %v986
  %v1019 = vmax.f32 %v917, %v987
  %v1020 = vmax.f32 %v922, %v988
  %v1021 = vmax.f32 %v925, %v989
  %v1022 = vmax.f32 %v930, %v990
  %v1023 = vmax.f32 %v933, %v991
  %v1024 = vmax.f32 %v938, %v992
  %v1025 = vmax.f32 %v941, %v993
  %v1026 = vmax.f32 %v946, %v994
  %v1027 = vmax.f32 %v949, %v995
  %v1028 = vmax.f32 %v954, %v996
  %v1029 = vmax.f32 %v957, %v997
  %v1030 = vmax.f32 %v962, %v998
  %v1031 = vmax.f32 %v965, %v999
  %v1032 = vpack.c.bf16 %v1001, %v1000
  %v1033 = vpack.c.bf16 %v1003, %v1002
  %v1034 = vpack.c.bf16 %v1005, %v1004
  %v1035 = vpack.c.bf16 %v1007, %v1006
  %v1036 = vpack.c.bf16 %v1009, %v1008
  %v1037 = vpack.c.bf16 %v1011, %v1010
  %v1038 = vpack.c.bf16 %v1013, %v1012
  %v1039 = vpack.c.bf16 %v1015, %v1014
  %v1040 = vpack.c.bf16 %v1017, %v1016
  %v1041 = vpack.c.bf16 %v1019, %v1018
  %v1042 = vpack.c.bf16 %v1021, %v1020
  %v1043 = vpack.c.bf16 %v1023, %v1022
  %v1044 = vpack.c.bf16 %v1025, %v1024
  %v1045 = vpack.c.bf16 %v1027, %v1026
  %v1046 = vpack.c.bf16 %v1029, %v1028
  %v1047 = vpack.c.bf16 %v1031, %v1030
  %v1048 = vld [vmem:[%s7] sm:$0x1]
  %v1049 = vld [vmem:[#allocation2] sm:$0x1]
  %1051 = vset.pattern.permute.xlu0 0
  %1052 = vperm.xlu0 %1051, %v1049
  %v1053 = vpop.permute.xlu0 %1052
  %v1055 = vlaneseq
  %v1056 = vshrl.u32 %v1055, 7
  %v1057 = vsub.s32 0, %v1056
  %v1058 = vrot.slane %v1053, %v1057
  %vm1059 = vcmask 261120
  %v1061 = vsel %vm1059, %v1048, 0
  %v1064 = vsel %vm1059, %v1032, 0
  %v1067 = vsel %vm1059, %v1033, 0
  %v1070 = vsel %vm1059, %v1034, 0
  %v1073 = vsel %vm1059, %v1035, 0
  %v1076 = vsel %vm1059, %v1036, 0
  %v1079 = vsel %vm1059, %v1037, 0
  %v1082 = vsel %vm1059, %v1038, 0
  %v1085 = vsel %vm1059, %v1039, 0
  %v1088 = vsel %vm1059, %v1040, 0
  %v1091 = vsel %vm1059, %v1041, 0
  %v1094 = vsel %vm1059, %v1042, 0
  %v1097 = vsel %vm1059, %v1043, 0
  %v1100 = vsel %vm1059, %v1044, 0
  %v1103 = vsel %vm1059, %v1045, 0
  %v1106 = vsel %vm1059, %v1046, 0
  %v1109 = vsel %vm1059, %v1047, 0
  %1111 = vmatprep.subr.bf16.mxu0 0
  %1112 = vmatpush1.bf16.xpose.msra.mxu0 %v1064
  %1113 = vmatprep.subr.bf16.mxu0 0
  %1114 = vmatpush1.bf16.xpose.msra.mxu0 %v1067
  %1115 = vmatprep.subr.bf16.mxu0 0
  %1116 = vmatpush1.bf16.xpose.msra.mxu0 %v1070
  %1117 = vmatprep.subr.bf16.mxu0 0
  %1118 = vmatpush1.bf16.xpose.msra.mxu0 %v1073
  %1119 = vmatprep.subr.bf16.mxu0 0
  %1120 = vmatpush1.bf16.xpose.msra.mxu0 %v1076
  %1121 = vmatprep.subr.bf16.mxu0 0
  %1122 = vmatpush1.bf16.xpose.msra.mxu0 %v1079
  %1123 = vmatprep.subr.bf16.mxu0 0
  %1124 = vmatpush1.bf16.xpose.msra.mxu0 %v1082
  %1125 = vmatprep.subr.bf16.mxu0 0
  %1126 = vmatpush1.bf16.xpose.msra.mxu0 %v1085
  %1127 = vmatprep.subr.bf16.mxu0 0
  %1128 = vmatpush1.bf16.xpose.msra.mxu0 %v1088
  %1129 = vmatprep.subr.bf16.mxu0 0
  %1130 = vmatpush1.bf16.xpose.msra.mxu0 %v1091
  %1131 = vmatprep.subr.bf16.mxu0 0
  %1132 = vmatpush1.bf16.xpose.msra.mxu0 %v1094
  %1133 = vmatprep.subr.bf16.mxu0 0
  %1134 = vmatpush1.bf16.xpose.msra.mxu0 %v1097
  %1135 = vmatprep.subr.bf16.mxu0 0
  %1136 = vmatpush1.bf16.xpose.msra.mxu0 %v1100
  %1137 = vmatprep.subr.bf16.mxu0 0
  %1138 = vmatpush1.bf16.xpose.msra.mxu0 %v1103
  %1139 = vmatprep.subr.bf16.mxu0 0
  %1140 = vmatpush1.bf16.xpose.msra.mxu0 %v1106
  %1141 = vmatprep.subr.bf16.mxu0 0
  %1142 = vmatpush1.bf16.xpose.msra.mxu0 %v1109
  %1143 = vmatprep.mubr.bf16.mxu0 0
  %1144 = vmatmul.mubr.bf16.gmra.mrb[0].mxu0 %v1061
  %v1145 = vpop.f32.mrb[0].mxu0
  %v1146 = vadd.f32 %v1058, %v1145
  %v1147 = vpop.f32.mrb[0].mxu0
  %v1148 = vadd.f32 %v1058, %v1147
  %v1149 = vpop.f32.mrb[0].mxu0
  %v1150 = vpop.f32.mrb[0].mxu0
  %1151 = vdwg.mxu0
  %v1154 = vcombine.low %v1146, %v1148
  %v1156 = vunpack.c.l.s4 1966171168
  %v1157 = vunpack.c.0.s8 %v1156
  %v1158 = vlaneseq
  %v1159 = vshrl.u32 %v1158, 7
  %v1160 = vsub.s32 %v1157, %v1159
  %v1161 = vrot.slane %v1154, %v1160
  %v1163 = vunpack.c.l.s4 1966171168
  %v1164 = vunpack.c.0.s8 %v1163
  %v1165 = vlaneseq
  %v1166 = vshrl.u32 %v1165, 7
  %v1167 = vsub.s32 %v1164, %v1166
  %v1168 = vrot.slane %v1161, %v1167
  %v1170 = vlaneseq
  %vm1171 = vcmp.ge.s32.totalorder %v1170, 0
  %vm1172 = vcmp.lt.s32.totalorder %v1170, 256
  %vm1173 = vmand %vm1171, %vm1172
  %1174 = vst.msk [vmem:[%s9] sm:$0x3] %vm1173, %v1168
  // Predicated region
  $region38: #{neural_network_forward.1} parent=0 // pred_check
    _
  $region39: #{neural_network_forward.1} parent=0 // pred_check_branch
    %1176 = sbr.rel (0) target = $region41
  $region40: #{neural_network_forward.1} parent=0 // pred_region
    _
  $region41: #{neural_network_forward.1} parent=0 // pred_fallthru
    _
  // Predicated region
  $region42: #{neural_network_forward.1} parent=0 // pred_check
    _
  $region43: #{neural_network_forward.1} parent=0 // pred_check_branch
    %1178 = sbr.rel (0) target = $region45
  $region44: #{neural_network_forward.1} parent=0 // pred_region
    _
  $region45: #{neural_network_forward.1} parent=0 // pred_fallthru
    _

</llo_original>
